<compile_context>
chip_gen: v7x
topology: tpu7x:2x2x1
jax: 0.10.0
libtpu: 0.0.40
codegen_flags: <defaults>
</compile_context>

<pallas_src>
import jax
import jax.numpy as jnp
from jax.experimental import pallas as pl
from jax.experimental.pallas import tpu as pltpu


# Packed parameter slab, f32, shape (24, 16), sublane-aligned per layer:
#   w1^T (6,8) -> rows  0:6 , cols 0:8     b1 (6,1) -> rows  0:6 , col 8
#   w2^T (4,6) -> rows  8:12, cols 0:6     b2 (4,1) -> rows  8:12, col 8
#   w3   (4,1) -> rows 16:20, col  0       b3 (1,1) -> row  16   , col 8
P_ROWS, P_COLS = 24, 16


def _sigmoid(h):
    # sigmoid(h) == 0.5 * (tanh(0.5*h) + 1): single EUP op + cheap VPU FMA.
    return 0.5 * (jnp.tanh(0.5 * h) + 1.0)


def mlp_kernel(xT_ref, p_ref, o_ref):
    xT = xT_ref[...]                      # (8, TB) f32, batch on lanes

    w1t = p_ref[0:6, 0:8]                 # (6, 8)
    b1 = p_ref[0:6, 8:9]                  # (6, 1)
    w2t = p_ref[8:12, 0:6]                # (4, 6)
    b2 = p_ref[8:12, 8:9]                 # (4, 1)
    w3 = p_ref[16:20, 0:1]                # (4, 1)  (original column orientation)
    b3 = p_ref[16:17, 8:9]                # (1, 1)

    # Layers 1 & 2 on the MXU with lane-dense (rows x TB) outputs.
    # TODO(synk): if v6e profiling shows the MXU reloading the tiny weights
    # per 128-lane chunk, switch these to explicit matmul_push_rhs / VPU MACs.
    h = _sigmoid(jnp.dot(w1t, xT, preferred_element_type=jnp.float32) + b1)   # (6, TB)
    h = _sigmoid(jnp.dot(w2t, h, preferred_element_type=jnp.float32) + b2)    # (4, TB)

    # Layer 3 (4 -> 1) on the VPU + XLU: broadcast-MAC and sublane reduce,
    # avoiding a 1-output-row MXU matmul.
    o_ref[...] = _sigmoid(jnp.sum(w3 * h, axis=0, keepdims=True) + b3)        # (1, TB)


def pack_params(params):
    (w1, b1), (w2, b2), (w3, b3) = params     # w: (in, out), b: (1, out)
    slab = jnp.zeros((P_ROWS, P_COLS), jnp.float32)
    slab = slab.at[0:6, 0:8].set(w1.T)
    slab = slab.at[0:6, 8:9].set(b1.T)
    slab = slab.at[8:12, 0:6].set(w2.T)
    slab = slab.at[8:12, 8:9].set(b2.T)
    slab = slab.at[16:20, 0:1].set(w3)
    slab = slab.at[16:17, 8:9].set(b3)
    return slab


def mlp_forward(x, packed_params, *, max_tb=8192):
    """x: (N, 8) f32 -> (N, 1) f32."""
    n = x.shape[0]
    xT = x.T.astype(jnp.float32)                       # (8, N): batch -> lanes
    n128 = ((n + 127) // 128) * 128                    # lane alignment
    tb = min(max_tb, n128)                             # adaptive batch tile
    n_pad = ((n128 + tb - 1) // tb) * tb
    if n_pad != n:
        xT = jnp.pad(xT, ((0, 0), (0, n_pad - n)))

    out = pl.pallas_call(
        mlp_kernel,
        out_shape=jax.ShapeDtypeStruct((1, n_pad), jnp.float32),
        grid=(n_pad // tb,),
        in_specs=[
            pl.BlockSpec((8, tb), lambda i: (0, i)),           # batch tile of x^T
            pl.BlockSpec((P_ROWS, P_COLS), lambda i: (0, 0)),  # resident params
        ],
        out_specs=pl.BlockSpec((1, tb), lambda i: (0, i)),     # lane-dense output
        compiler_params=pltpu.CompilerParams(
            dimension_semantics=("parallel",)),
    )(xT, packed_params)
    return out[:, :n].T                                # (N, 1)


def init_linear(key, in_f, out_f):
    # PyTorch-style uniform(-1/sqrt(in), 1/sqrt(in)); weights stored (in, out)
    # so the reference computes y = x @ W + b.
    kw, kb = jax.random.split(key)
    bound = 1.0 / jnp.sqrt(jnp.float32(in_f))
    w = jax.random.uniform(kw, (in_f, out_f), jnp.float32, -bound, bound)
    b = jax.random.uniform(kb, (1, out_f), jnp.float32, -bound, bound)
    return w, b


def reference_forward(x, params):
    h = x
    for w, b in params:
        h = jax.nn.sigmoid(h @ w + b)
    return h


if __name__ == "__main__":
    key = jax.random.PRNGKey(0)
    kx, kx2, k1, k2, k3 = jax.random.split(key, 5)

    params = (
        init_linear(k1, 8, 6),
        init_linear(k2, 6, 4),
        init_linear(k3, 4, 1),
    )
    packed = pack_params(params)

    # Small-batch case (matches the original module usage).
    batch = 8
    x = jax.random.normal(kx, (batch, 8), jnp.float32)
    out = jax.block_until_ready(mlp_forward(x, packed))
    ref = reference_forward(x, params)
    assert out.shape == (batch, 1)
    assert jnp.allclose(out, ref, atol=1e-5, rtol=1e-5)

    # Non-multiple-of-128 batch exercises lane padding on the batch axis.
    x2 = jax.random.normal(kx2, (300, 8), jnp.float32)
    out2 = jax.block_until_ready(mlp_forward(x2, packed))
    ref2 = reference_forward(x2, params)
    assert out2.shape == (300, 1)
    assert jnp.allclose(out2, ref2, atol=1e-5, rtol=1e-5)

    print("KERNEL_OK")
</pallas_src>

<mosaic_0001>
module attributes {stable_mosaic.version = 11 : i64} {
  func.func @mlp_kernel(%arg0: i32, %arg1: memref<8x128xf32, #tpu.memory_space<vmem>>, %arg2: memref<24x16xf32, #tpu.memory_space<vmem>>, %arg3: memref<1x128xf32, #tpu.memory_space<vmem>>) attributes {dimension_semantics = [#tpu.dimension_semantics<parallel>], iteration_bounds = array<i64: 1>, scalar_prefetch = 0 : i64, scratch_operands = 0 : i64, tpu.core_type = #tpu.core_type<tc>, window_params = [{transform_indices = @transform_0, window_bounds = array<i64: 8, 128>}, {pipeline_mode = #tpu.pipeline_mode<synchronous>, transform_indices = @transform_1, window_bounds = array<i64: 24, 16>}, {transform_indices = @transform_2, window_bounds = array<i64: 1, 128>}]} {
    %c0 = arith.constant 0 : index
    %c0_0 = arith.constant 0 : index
    %0 = vector.load %arg1[%c0, %c0_0] : memref<8x128xf32, #tpu.memory_space<vmem>>, vector<8x128xf32>
    %c0_1 = arith.constant 0 : index
    %c0_2 = arith.constant 0 : index
    %1 = vector.load %arg2[%c0_1, %c0_2] : memref<24x16xf32, #tpu.memory_space<vmem>>, vector<6x8xf32>
    %c0_3 = arith.constant 0 : index
    %c8 = arith.constant 8 : index
    %2 = vector.load %arg2[%c0_3, %c8] : memref<24x16xf32, #tpu.memory_space<vmem>>, vector<6x1xf32>
    %c8_4 = arith.constant 8 : index
    %c0_5 = arith.constant 0 : index
    %3 = vector.load %arg2[%c8_4, %c0_5] : memref<24x16xf32, #tpu.memory_space<vmem>>, vector<4x6xf32>
    %c8_6 = arith.constant 8 : index
    %c8_7 = arith.constant 8 : index
    %4 = vector.load %arg2[%c8_6, %c8_7] : memref<24x16xf32, #tpu.memory_space<vmem>>, vector<4x1xf32>
    %c16 = arith.constant 16 : index
    %c0_8 = arith.constant 0 : index
    %5 = vector.load %arg2[%c16, %c0_8] : memref<24x16xf32, #tpu.memory_space<vmem>>, vector<4x1xf32>
    %c16_9 = arith.constant 16 : index
    %c8_10 = arith.constant 8 : index
    %6 = vector.load %arg2[%c16_9, %c8_10] : memref<24x16xf32, #tpu.memory_space<vmem>>, vector<1x1xf32>
    %cst = arith.constant dense<0.000000e+00> : vector<6x128xf32>
    %7 = tpu.matmul %1, %0, %cst {dimension_numbers = #tpu.dot_dimension_numbers<[1], [0], [0], [1], [0, 0, 1, 1], [], []>} : vector<6x8xf32>, vector<8x128xf32>, vector<6x128xf32> -> vector<6x128xf32>
    %8 = vector.broadcast %2 : vector<6x1xf32> to vector<6x128xf32>
    %9 = arith.addf %7, %8 : vector<6x128xf32>
    %cst_11 = arith.constant 5.000000e-01 : f32
    %10 = vector.broadcast %cst_11 : f32 to vector<6x128xf32>
    %11 = arith.mulf %10, %9 : vector<6x128xf32>
    %12 = math.tanh %11 : vector<6x128xf32>
    %cst_12 = arith.constant 1.000000e+00 : f32
    %13 = vector.broadcast %cst_12 : f32 to vector<6x128xf32>
    %14 = arith.addf %12, %13 : vector<6x128xf32>
    %cst_13 = arith.constant 5.000000e-01 : f32
    %15 = vector.broadcast %cst_13 : f32 to vector<6x128xf32>
    %16 = arith.mulf %15, %14 : vector<6x128xf32>
    %cst_14 = arith.constant dense<0.000000e+00> : vector<4x128xf32>
    %17 = tpu.matmul %3, %16, %cst_14 {dimension_numbers = #tpu.dot_dimension_numbers<[1], [0], [0], [1], [0, 0, 1, 1], [], []>} : vector<4x6xf32>, vector<6x128xf32>, vector<4x128xf32> -> vector<4x128xf32>
    %18 = vector.broadcast %4 : vector<4x1xf32> to vector<4x128xf32>
    %19 = arith.addf %17, %18 : vector<4x128xf32>
    %cst_15 = arith.constant 5.000000e-01 : f32
    %20 = vector.broadcast %cst_15 : f32 to vector<4x128xf32>
    %21 = arith.mulf %20, %19 : vector<4x128xf32>
    %22 = math.tanh %21 : vector<4x128xf32>
    %cst_16 = arith.constant 1.000000e+00 : f32
    %23 = vector.broadcast %cst_16 : f32 to vector<4x128xf32>
    %24 = arith.addf %22, %23 : vector<4x128xf32>
    %cst_17 = arith.constant 5.000000e-01 : f32
    %25 = vector.broadcast %cst_17 : f32 to vector<4x128xf32>
    %26 = arith.mulf %25, %24 : vector<4x128xf32>
    %27 = vector.broadcast %5 : vector<4x1xf32> to vector<4x128xf32>
    %28 = arith.mulf %27, %26 : vector<4x128xf32>
    %cst_18 = arith.constant dense<0.000000e+00> : vector<128xf32>
    %29 = vector.multi_reduction <add>, %28, %cst_18 [0] : vector<4x128xf32> to vector<128xf32>
    %30 = vector.shape_cast %29 : vector<128xf32> to vector<1x128xf32>
    %31 = vector.broadcast %6 : vector<1x1xf32> to vector<1x128xf32>
    %32 = arith.addf %30, %31 : vector<1x128xf32>
    %cst_19 = arith.constant 5.000000e-01 : f32
    %33 = vector.broadcast %cst_19 : f32 to vector<1x128xf32>
    %34 = arith.mulf %33, %32 : vector<1x128xf32>
    %35 = math.tanh %34 : vector<1x128xf32>
    %cst_20 = arith.constant 1.000000e+00 : f32
    %36 = vector.broadcast %cst_20 : f32 to vector<1x128xf32>
    %37 = arith.addf %35, %36 : vector<1x128xf32>
    %cst_21 = arith.constant 5.000000e-01 : f32
    %38 = vector.broadcast %cst_21 : f32 to vector<1x128xf32>
    %39 = arith.mulf %38, %37 : vector<1x128xf32>
    %c0_22 = arith.constant 0 : index
    %c0_23 = arith.constant 0 : index
    %40 = vector.load %arg3[%c0_22, %c0_23] : memref<1x128xf32, #tpu.memory_space<vmem>>, vector<1x128xf32>
    tpu.vector_store %arg3[%c0_22, %c0_23], %39 {strides = array<i32>} : memref<1x128xf32, #tpu.memory_space<vmem>>, vector<1x128xf32>,
    return
  }
  func.func @transform_0(%arg0: i32) -> (i32, i32) {
    %c0_i32 = arith.constant 0 : i32
    %c0_i32_0 = arith.constant 0 : i32
    return %c0_i32, %arg0 : i32, i32
  }
  func.func @transform_1(%arg0: i32) -> (i32, i32) {
    %c0_i32 = arith.constant 0 : i32
    %c0_i32_0 = arith.constant 0 : i32
    %c0_i32_1 = arith.constant 0 : i32
    return %c0_i32, %c0_i32_0 : i32, i32
  }
  func.func @transform_2(%arg0: i32) -> (i32, i32) {
    %c0_i32 = arith.constant 0 : i32
    %c0_i32_0 = arith.constant 0 : i32
    return %c0_i32, %arg0 : i32, i32
  }
}

</mosaic_0001>

<llo_original>
// kernel: tpu_custom_call.1
$region0: #{tpu_custom_call.1}
  #allocation0 [shape = 'u32[]', space=smem, size = 0x4, offset = 0x4, fixed_abs, tag = 'smem constant byte address 0x4 - core index']
  #allocation1 [shape = 'u32[144,128]{1,0:T(1,128)}', space=vmem, size = 0x12000, scoped, tag = 'internal scratch']
  %s0 = inlined_call_operand.vmem [shape: f32[8,128], index: 0, kind: input, shape index: {}]
  %s1 = inlined_call_operand.vmem [shape: f32[24,16], index: 1, kind: input, shape index: {}]
  %s2 = inlined_call_operand.hbm [shape: f32[1,128], index: 2, kind: output, shape index: {}]
  %s3 = sld [smem:[#allocation0]]
  $region18: #{tpu_custom_call.1} parent=0
    _
  %s5 = ssub.s32 1, %s3
  %s6 = scalar_select 0, %s5, %s3
  $region1: #{tpu_custom_call.1} parent=0
    #allocation2 [shape = 'u8[512]{0}', space=vmem, size = 0x400, scoped, tag = 'output window, operand 0, single buffered']
    #allocation3 [shape = 's32[1]{0}', space=sflag, size = 0x4, scoped, tag = 'scoped memory for tpu_custom_call.1']
    %7 = vsyncpa [#allocation3], 0
    // Predicated region
    $region2: #{tpu_custom_call.1} parent=1 // pred_check
      _
    $region3: #{tpu_custom_call.1} parent=1 // pred_check_branch
      %9 = sbr.rel (0) target = $region5
    $region4: #{tpu_custom_call.1} parent=1 // pred_region
      _
    $region5: #{tpu_custom_call.1} parent=1 // pred_fallthru
      _
    // Predicated region
    $region6: #{tpu_custom_call.1} parent=1 // pred_check
      _
    $region7: #{tpu_custom_call.1} parent=1 // pred_check_branch
      %11 = sbr.rel (0) target = $region9
    $region8: #{tpu_custom_call.1} parent=1 // pred_region
      _
    $region9: #{tpu_custom_call.1} parent=1 // pred_fallthru
      _
    %v12 = vld [vmem:[%s0] sm:$0xff]
    %v13 = vld [vmem:[%s1] sm:$0x3f]
    %v14 = vld [vmem:[%s1 + $0x8] sm:$0xf]
    %v15 = vld [vmem:[%s1 + $0x10] sm:$0xf]
    %v16 = vld [vmem:[%s1 + $0x10] sm:$0x1]
    %18 = vset.pattern.permute.xlu0 8
    %19 = vperm.xlu0 %18, %v13
    %v20 = vpop.permute.xlu0 %19
    %vm22 = vcmask 64512
    %v23 = vsel %vm22, %v13, 0
    %25 = vmatprep.subr.mxu0 0.0
    %26 = vmatpush1.msra.mxu0 %v12
    %27 = vmatprep.subr.mxu0 0.0
    %28 = vmatpush1.msra.mxu0 0.0
    %29 = vmatprep.subr.mxu0 0.0
    %30 = vmatpush1.msra.mxu0 0.0
    %31 = vmatprep.subr.mxu0 0.0
    %32 = vmatpush1.msra.mxu0 0.0
    %33 = vmatprep.subr.mxu0 0.0
    %34 = vmatpush1.msra.mxu0 0.0
    %35 = vmatprep.subr.mxu0 0.0
    %36 = vmatpush1.msra.mxu0 0.0
    %37 = vmatprep.subr.mxu0 0.0
    %38 = vmatpush1.msra.mxu0 0.0
    %39 = vmatprep.subr.mxu0 0.0
    %40 = vmatpush1.msra.mxu0 0.0
    %41 = vmatprep.subr.mxu0 0.0
    %42 = vmatpush1.msra.mxu0 0.0
    %43 = vmatprep.subr.mxu0 0.0
    %44 = vmatpush1.msra.mxu0 0.0
    %45 = vmatprep.subr.mxu0 0.0
    %46 = vmatpush1.msra.mxu0 0.0
    %47 = vmatprep.subr.mxu0 0.0
    %48 = vmatpush1.msra.mxu0 0.0
    %49 = vmatprep.subr.mxu0 0.0
    %50 = vmatpush1.msra.mxu0 0.0
    %51 = vmatprep.subr.mxu0 0.0
    %52 = vmatpush1.msra.mxu0 0.0
    %53 = vmatprep.subr.mxu0 0.0
    %54 = vmatpush1.msra.mxu0 0.0
    %55 = vmatprep.subr.mxu0 0.0
    %56 = vmatpush1.msra.mxu0 0.0
    %57 = vmatprep.subr.mxu0 0.0
    %58 = vmatpush1.msra.mxu0 0.0
    %59 = vmatprep.subr.mxu0 0.0
    %60 = vmatpush1.msra.mxu0 0.0
    %61 = vmatprep.subr.mxu0 0.0
    %62 = vmatpush1.msra.mxu0 0.0
    %63 = vmatprep.subr.mxu0 0.0
    %64 = vmatpush1.msra.mxu0 0.0
    %65 = vmatprep.subr.mxu0 0.0
    %66 = vmatpush1.msra.mxu0 0.0
    %67 = vmatprep.subr.mxu0 0.0
    %68 = vmatpush1.msra.mxu0 0.0
    %69 = vmatprep.subr.mxu0 0.0
    %70 = vmatpush1.msra.mxu0 0.0
    %71 = vmatprep.subr.mxu0 0.0
    %72 = vmatpush1.msra.mxu0 0.0
    %73 = vmatprep.subr.mxu0 0.0
    %74 = vmatpush1.msra.mxu0 0.0
    %75 = vmatprep.subr.mxu0 0.0
    %76 = vmatpush1.msra.mxu0 0.0
    %77 = vmatprep.subr.mxu0 0.0
    %78 = vmatpush1.msra.mxu0 0.0
    %79 = vmatprep.subr.mxu0 0.0
    %80 = vmatpush1.msra.mxu0 0.0
    %81 = vmatprep.subr.mxu0 0.0
    %82 = vmatpush1.msra.mxu0 0.0
    %83 = vmatprep.subr.mxu0 0.0
    %84 = vmatpush1.msra.mxu0 0.0
    %85 = vmatprep.subr.mxu0 0.0
    %86 = vmatpush1.msra.mxu0 0.0
    %87 = vmatprep.subr.mxu0 0.0
    %88 = vmatpush1.msra.mxu0 0.0
    %89 = vmatprep.mubr.f32.mxu0 0.0
    %90 = vmatmul.mubr.f32.gmra.mrb[0].mxu0 %v23
    %v91 = vpop.f32.mrb[0].mxu0
    %v92 = vadd.f32 %v20, %v91
    %v93 = vpop.f32.mrb[0].mxu0
    %94 = vdwg.mxu0
    %v95 = vmul.f32 %v92, 0.5
    %v96 = vtanh.pop %v95
    %v97 = vadd.f32 %v96, 1.0
    %v98 = vmul.f32 %v97, 0.5
    %100 = vset.pattern.permute.xlu0 8
    %101 = vperm.xlu0 %100, %v14
    %v102 = vpop.permute.xlu0 %101
    %vm104 = vcmask 48128
    %v105 = vsel %vm104, %v14, 0
    %vm107 = vcmask 1045504
    %v109 = vsel %vm107, %v98, 0
    %111 = vmatprep.subr.mxu0 0.0
    %112 = vmatpush1.msra.mxu0 %v109
    %113 = vmatprep.subr.mxu0 0.0
    %114 = vmatpush1.msra.mxu0 0.0
    %115 = vmatprep.subr.mxu0 0.0
    %116 = vmatpush1.msra.mxu0 0.0
    %117 = vmatprep.subr.mxu0 0.0
    %118 = vmatpush1.msra.mxu0 0.0
    %119 = vmatprep.subr.mxu0 0.0
    %120 = vmatpush1.msra.mxu0 0.0
    %121 = vmatprep.subr.mxu0 0.0
    %122 = vmatpush1.msra.mxu0 0.0
    %123 = vmatprep.subr.mxu0 0.0
    %124 = vmatpush1.msra.mxu0 0.0
    %125 = vmatprep.subr.mxu0 0.0
    %126 = vmatpush1.msra.mxu0 0.0
    %127 = vmatprep.subr.mxu0 0.0
    %128 = vmatpush1.msra.mxu0 0.0
    %129 = vmatprep.subr.mxu0 0.0
    %130 = vmatpush1.msra.mxu0 0.0
    %131 = vmatprep.subr.mxu0 0.0
    %132 = vmatpush1.msra.mxu0 0.0
    %133 = vmatprep.subr.mxu0 0.0
    %134 = vmatpush1.msra.mxu0 0.0
    %135 = vmatprep.subr.mxu0 0.0
    %136 = vmatpush1.msra.mxu0 0.0
    %137 = vmatprep.subr.mxu0 0.0
    %138 = vmatpush1.msra.mxu0 0.0
    %139 = vmatprep.subr.mxu0 0.0
    %140 = vmatpush1.msra.mxu0 0.0
    %141 = vmatprep.subr.mxu0 0.0
    %142 = vmatpush1.msra.mxu0 0.0
    %143 = vmatprep.subr.mxu0 0.0
    %144 = vmatpush1.msra.mxu0 0.0
    %145 = vmatprep.subr.mxu0 0.0
    %146 = vmatpush1.msra.mxu0 0.0
    %147 = vmatprep.subr.mxu0 0.0
    %148 = vmatpush1.msra.mxu0 0.0
    %149 = vmatprep.subr.mxu0 0.0
    %150 = vmatpush1.msra.mxu0 0.0
    %151 = vmatprep.subr.mxu0 0.0
    %152 = vmatpush1.msra.mxu0 0.0
    %153 = vmatprep.subr.mxu0 0.0
    %154 = vmatpush1.msra.mxu0 0.0
    %155 = vmatprep.subr.mxu0 0.0
    %156 = vmatpush1.msra.mxu0 0.0
    %157 = vmatprep.subr.mxu0 0.0
    %158 = vmatpush1.msra.mxu0 0.0
    %159 = vmatprep.subr.mxu0 0.0
    %160 = vmatpush1.msra.mxu0 0.0
    %161 = vmatprep.subr.mxu0 0.0
    %162 = vmatpush1.msra.mxu0 0.0
    %163 = vmatprep.subr.mxu0 0.0
    %164 = vmatpush1.msra.mxu0 0.0
    %165 = vmatprep.subr.mxu0 0.0
    %166 = vmatpush1.msra.mxu0 0.0
    %167 = vmatprep.subr.mxu0 0.0
    %168 = vmatpush1.msra.mxu0 0.0
    %169 = vmatprep.subr.mxu0 0.0
    %170 = vmatpush1.msra.mxu0 0.0
    %171 = vmatprep.subr.mxu0 0.0
    %172 = vmatpush1.msra.mxu0 0.0
    %173 = vmatprep.subr.mxu0 0.0
    %174 = vmatpush1.msra.mxu0 0.0
    %175 = vmatprep.mubr.f32.mxu0 0.0
    %176 = vmatmul.mubr.f32.gmra.mrb[0].mxu0 %v105
    %v177 = vpop.f32.mrb[0].mxu0
    %v178 = vadd.f32 %v102, %v177
    %v179 = vpop.f32.mrb[0].mxu0
    %180 = vdwg.mxu0
    %v181 = vmul.f32 %v178, 0.5
    %v182 = vtanh.pop %v181
    %v183 = vadd.f32 %v182, 1.0
    %v184 = vmul.f32 %v183, 0.5
    %186 = vset.pattern.permute.xlu0 0
    %187 = vperm.xlu0 %186, %v15
    %v188 = vpop.permute.xlu0 %187
    %v190 = vmul.f32 %v188, %v184
    %vm191 = vcmask 1043456
    %v192 = vsel %vm191, %v190, 0.0
    %v193 = vrot.slane %v192, 4
    %v194 = vadd.f32 %v192, %v193
    %v195 = vrot.slane %v194, 2
    %v196 = vadd.f32 %v194, %v195
    %v197 = vrot.slane %v196, 1
    %v198 = vadd.f32 %v196, %v197
    %200 = vset.pattern.permute.xlu0 8
    %201 = vperm.xlu0 %200, %v16
    %v202 = vpop.permute.xlu0 %201
    %v204 = vadd.f32 %v198, %v202
    %v205 = vmul.f32 %v204, 0.5
    %v206 = vtanh.pop %v205
    %v207 = vadd.f32 %v206, 1.0
    %v208 = vmul.f32 %v207, 0.5
    %209 = vst [vmem:[#allocation2] sm:$0x1] %v208
    // Predicated region
    $region10: #{tpu_custom_call.1} parent=1 // pred_check
      _
    $region11: #{tpu_custom_call.1} parent=1 // pred_check_branch
      %211 = sbr.rel (0) target = $region13
    $region12: #{tpu_custom_call.1} parent=1 // pred_region
      %s213 = ssub.s32 16, 16
      %214 = vsyncadd [#allocation3], %s213
      %s216 = sshll.u32 [#allocation2], 4
      %s217 = int_to_ptr.vmem [resolvable:$true] %s216
      %219 = dma.vmem_to_hbm [thread:$0]  %s217, 16, %s2, [#allocation3]
    $region13: #{tpu_custom_call.1} parent=1 // pred_fallthru
      _
    // Predicated region
    $region14: #{tpu_custom_call.1} parent=1 // pred_check
      _
    $region15: #{tpu_custom_call.1} parent=1 // pred_check_branch
      %221 = sbr.rel (0) target = $region17
    $region16: #{tpu_custom_call.1} parent=1 // pred_region
      %222 = dma.done [#allocation3], 16
    $region17: #{tpu_custom_call.1} parent=1 // pred_fallthru
      _
    %223 = vsyncpa [#allocation3], 1

</llo_original>
